<compile_context>
chip_gen: v7x
topology: tpu7x:2x2x1
jax: 0.10.0
libtpu: 0.0.40
codegen_flags: <defaults>
</compile_context>

<pallas_src>
import functools
import math

import jax
import jax.numpy as jnp
from jax import lax
from jax.experimental import pallas as pl
from jax.experimental.pallas import tpu as pltpu


# Tile caps sized so double-buffered f32 slabs stay well inside the scoped
# VMEM defaults on every generation (16 MiB v5e, 32 MiB v6e/v7x):
#   row tiles:  512 rows x 512 features x 4 B  ~= 1 MiB per slab
#   matmul:     (256,512) + (512,256) + (256,256) blocks + f32 acc ~= 1.5 MiB
_ROW_TILE = 512
_TILE_M, _TILE_N, _TILE_K = 256, 256, 512


def _largest_divisor(n, cap):
    d = max(1, min(n, cap))
    while n % d:
        d -= 1
    return d


# ---------------------------------------------------------------------------
# Fused elementwise add (positional add, residuals, cross-context sums)
# ---------------------------------------------------------------------------
def _addn_kernel(*refs):
    *in_refs, o_ref = refs
    acc = in_refs[0][...].astype(jnp.float32)
    for r in in_refs[1:]:
        acc = acc + r[...].astype(jnp.float32)
    o_ref[...] = acc.astype(o_ref.dtype)


def fused_add(*xs):
    shape = xs[0].shape
    d = shape[-1]
    rows = math.prod(shape[:-1])
    tr = _largest_divisor(rows, _ROW_TILE)
    spec = pl.BlockSpec((tr, d), lambda i: (i, 0))
    out = pl.pallas_call(
        _addn_kernel,
        out_shape=jax.ShapeDtypeStruct((rows, d), xs[0].dtype),
        grid=(rows // tr,),
        in_specs=[spec] * len(xs),
        out_specs=spec,
        compiler_params=pltpu.CompilerParams(dimension_semantics=("parallel",)),
    )(*[x.reshape(rows, d) for x in xs])
    return out.reshape(shape)


# ---------------------------------------------------------------------------
# Row-tiled LayerNorm (reduction over last dim D)
# ---------------------------------------------------------------------------
def _layernorm_kernel(x_ref, g_ref, b_ref, o_ref, *, eps):
    x = x_ref[...].astype(jnp.float32)
    g = g_ref[...].astype(jnp.float32)   # (1, D) block, resident across grid
    b = b_ref[...].astype(jnp.float32)
    mu = jnp.mean(x, axis=-1, keepdims=True)
    var = jnp.mean(jnp.square(x - mu), axis=-1, keepdims=True)
    y = (x - mu) * lax.rsqrt(var + eps)
    o_ref[...] = (y * g + b).astype(o_ref.dtype)


def layer_norm(x, gamma, beta, *, eps=1e-5):
    shape = x.shape
    d = shape[-1]
    rows = math.prod(shape[:-1])
    tr = _largest_divisor(rows, _ROW_TILE)
    row_spec = pl.BlockSpec((tr, d), lambda i: (i, 0))
    par_spec = pl.BlockSpec((1, d), lambda i: (0, 0))
    out = pl.pallas_call(
        functools.partial(_layernorm_kernel, eps=float(eps)),
        out_shape=jax.ShapeDtypeStruct((rows, d), x.dtype),
        grid=(rows // tr,),
        in_specs=[row_spec, par_spec, par_spec],
        out_specs=row_spec,
        compiler_params=pltpu.CompilerParams(dimension_semantics=("parallel",)),
    )(x.reshape(rows, d), gamma.reshape(1, d), beta.reshape(1, d))
    return out.reshape(shape)


# ---------------------------------------------------------------------------
# Tiled matmul + fused bias (+ optional exact GELU) epilogue
# ---------------------------------------------------------------------------
def _matmul_kernel(x_ref, w_ref, b_ref, o_ref, acc_ref, *, activation, bias_scale):
    k = pl.program_id(2)

    @pl.when(k == 0)
    def _():
        acc_ref[...] = jnp.zeros_like(acc_ref)

    acc_ref[...] += jnp.dot(x_ref[...], w_ref[...],
                            preferred_element_type=jnp.float32)

    @pl.when(k == pl.num_programs(2) - 1)
    def _():
        y = acc_ref[...] + bias_scale * b_ref[...].astype(jnp.float32)
        if activation == "gelu":
            y = jax.nn.gelu(y, approximate=False)   # exact erf, matches F.gelu
        o_ref[...] = y.astype(o_ref.dtype)


def linear(x, w, b=None, *, activation=None, bias_scale=1.0):
    """y = x @ w + bias_scale * b, with an optional fused GELU. w is (K, N)."""
    shape = x.shape
    k_dim = shape[-1]
    m_dim = math.prod(shape[:-1])
    n_dim = w.shape[1]
    if b is None:
        b = jnp.zeros((n_dim,), x.dtype)
    tm = _largest_divisor(m_dim, _TILE_M)
    tn = _largest_divisor(n_dim, _TILE_N)
    tk = _largest_divisor(k_dim, _TILE_K)
    out = pl.pallas_call(
        functools.partial(_matmul_kernel, activation=activation,
                          bias_scale=float(bias_scale)),
        out_shape=jax.ShapeDtypeStruct((m_dim, n_dim), x.dtype),
        grid=(m_dim // tm, n_dim // tn, k_dim // tk),
        in_specs=[pl.BlockSpec((tm, tk), lambda i, j, kk: (i, kk)),
                  pl.BlockSpec((tk, tn), lambda i, j, kk: (kk, j)),
                  pl.BlockSpec((1, tn), lambda i, j, kk: (0, j))],
        out_specs=pl.BlockSpec((tm, tn), lambda i, j, kk: (i, j)),
        scratch_shapes=[pltpu.VMEM((tm, tn), jnp.float32)],
        compiler_params=pltpu.CompilerParams(
            dimension_semantics=("parallel", "parallel", "arbitrary")),
    )(x.reshape(m_dim, k_dim), w, b.reshape(1, n_dim))
    return out.reshape(shape[:-1] + (n_dim,))


# ---------------------------------------------------------------------------
# Multi-head scaled-dot-product attention, one (batch, head) per grid step
# ---------------------------------------------------------------------------
def _mha_kernel(q_ref, k_ref, v_ref, o_ref, *, scale):
    q = q_ref[0].astype(jnp.float32)
    k = k_ref[0].astype(jnp.float32)
    v = v_ref[0].astype(jnp.float32)
    s = lax.dot_general(q, k, (((1,), (1,)), ((), ())),
                        preferred_element_type=jnp.float32) * scale
    s = s - jnp.max(s, axis=-1, keepdims=True)
    p = jnp.exp(s)
    p = p / jnp.sum(p, axis=-1, keepdims=True)
    o = jnp.dot(p, v, preferred_element_type=jnp.float32)
    o_ref[0] = o.astype(o_ref.dtype)


def mha(q, k, v, *, scale):
    # TODO(synk): for long sequences this should become a flash-style
    # online-softmax kernel tiled over keys; whole-row softmax is fine here.
    bsz, h, n, hd = q.shape
    bh = bsz * h
    spec = pl.BlockSpec((1, n, hd), lambda i: (i, 0, 0))
    out = pl.pallas_call(
        functools.partial(_mha_kernel, scale=float(scale)),
        out_shape=jax.ShapeDtypeStruct((bh, n, hd), q.dtype),
        grid=(bh,),
        in_specs=[spec, spec, spec],
        out_specs=spec,
        compiler_params=pltpu.CompilerParams(dimension_semantics=("parallel",)),
    )(q.reshape(bh, n, hd), k.reshape(bh, n, hd), v.reshape(bh, n, hd))
    return out.reshape(bsz, h, n, hd)


# ---------------------------------------------------------------------------
# Head plumbing (layout-only, done in the wrapper)
# ---------------------------------------------------------------------------
def _split_qkv_heads(qkv, heads):
    bsz, n, c3 = qkv.shape
    c = c3 // 3
    hd = c // heads
    t = qkv.reshape(bsz, n, 3, heads, hd).transpose(2, 0, 3, 1, 4)
    return t[0], t[1], t[2]


def _merge_heads(x):
    bsz, h, n, hd = x.shape
    return x.transpose(0, 2, 1, 3).reshape(bsz, n, h * hd)


# ---------------------------------------------------------------------------
# coTransformer forward built from the kernels above (eval-mode dropout)
# ---------------------------------------------------------------------------
def co_transformer_forward(m1, m2, m3, m4, pos, params, *, heads, depth):
    ms = [m1, m2, m3, m4]
    _, _, c = m1.shape
    scale = (c // heads) ** (-0.5)
    spe = None
    for j in range(depth):
        p = params[j]
        ms = [fused_add(ms[i], pos[i]) for i in range(4)]

        # --- Residual(PreNormDrop(SelfAttention)) per stream ---
        new_ms = []
        for i in range(4):
            x = layer_norm(ms[i], p["sa_ln_g"][i], p["sa_ln_b"][i])
            q, k, v = _split_qkv_heads(linear(x, p["sa_wqkv"][i]), heads)
            o = _merge_heads(mha(q, k, v, scale=scale))
            o = linear(o, p["sa_wproj"][i], p["sa_bproj"][i])
            new_ms.append(fused_add(ms[i], o))
        ms = new_ms

        # --- CrossResidual(CrossPreNormDrop(CrossAttention)) ---
        ns = [layer_norm(ms[i], p["c_ln_g"][i], p["c_ln_b"][i]) for i in range(4)]
        qs, ks, vs = [], [], []
        for i in range(4):
            q, k, v = _split_qkv_heads(linear(ns[i], p["c_wqkv"][i]), heads)
            qs.append(q); ks.append(k); vs.append(v)
        cross = []
        for i in range(4):
            ctx = [_merge_heads(mha(qs[i], ks[t], vs[t], scale=scale))
                   for t in range(4) if t != i]
            summed = fused_add(*ctx)
            # proj_i(a)+proj_i(b)+proj_i(c) == (a+b+c) @ W_i + 3*b_i
            y = linear(summed, p["c_wproj"][i], p["c_bproj"][i], bias_scale=3.0)
            cross.append(fused_add(ms[i], y))

        # --- Residual(PreNorm(FeedForward)) per stream ---
        spe = []
        for i in range(4):
            x = layer_norm(cross[i], p["ff_ln_g"][i], p["ff_ln_b"][i])
            h = linear(x, p["ff_w1"][i], p["ff_b1"][i], activation="gelu")
            y = linear(h, p["ff_w2"][i], p["ff_b2"][i])
            spe.append(fused_add(cross[i], y))
        # NOTE: like the PyTorch reference, `ms` (post self-attention) — not
        # `spe` — is what carries over to the next depth iteration.
    return tuple(spe)


# ---------------------------------------------------------------------------
# Pure-JAX reference: literal port of the PyTorch forward (eval mode)
# ---------------------------------------------------------------------------
def _ref_forward(m1, m2, m3, m4, pos, params, *, heads, depth):
    def ln(x, g, b, eps=1e-5):
        mu = jnp.mean(x, axis=-1, keepdims=True)
        var = jnp.mean(jnp.square(x - mu), axis=-1, keepdims=True)
        return (x - mu) / jnp.sqrt(var + eps) * g + b

    def split(qkv, bsz, n, c):
        t = qkv.reshape(bsz, n, 3, heads, c // heads).transpose(2, 0, 3, 1, 4)
        return t[0], t[1], t[2]

    def attend(q, k, v, scale):
        a = jax.nn.softmax(jnp.einsum("bhqd,bhkd->bhqk", q, k) * scale, axis=-1)
        o = jnp.einsum("bhqk,bhkd->bhqd", a, v)
        bsz, h, n, hd = o.shape
        return o.transpose(0, 2, 1, 3).reshape(bsz, n, h * hd)

    ms = [m1, m2, m3, m4]
    bsz, n, c = m1.shape
    scale = (c // heads) ** (-0.5)
    spe = None
    for j in range(depth):
        p = params[j]
        ms = [ms[i] + pos[i] for i in range(4)]
        new_ms = []
        for i in range(4):
            x = ln(ms[i], p["sa_ln_g"][i], p["sa_ln_b"][i])
            q, k, v = split(x @ p["sa_wqkv"][i], bsz, n, c)
            o = attend(q, k, v, scale) @ p["sa_wproj"][i] + p["sa_bproj"][i]
            new_ms.append(ms[i] + o)
        ms = new_ms
        ns = [ln(ms[i], p["c_ln_g"][i], p["c_ln_b"][i]) for i in range(4)]
        qs, ks, vs = [], [], []
        for i in range(4):
            q, k, v = split(ns[i] @ p["c_wqkv"][i], bsz, n, c)
            qs.append(q); ks.append(k); vs.append(v)
        cross = []
        for i in range(4):
            acc = jnp.zeros_like(ms[i])
            for t in range(4):
                if t == i:
                    continue
                x = attend(qs[i], ks[t], vs[t], scale)
                acc = acc + (x @ p["c_wproj"][i] + p["c_bproj"][i])
            cross.append(ms[i] + acc)
        spe = []
        for i in range(4):
            x = ln(cross[i], p["ff_ln_g"][i], p["ff_ln_b"][i])
            h = jax.nn.gelu(x @ p["ff_w1"][i] + p["ff_b1"][i], approximate=False)
            y = h @ p["ff_w2"][i] + p["ff_b2"][i]
            spe.append(cross[i] + y)
    return tuple(spe)


# ---------------------------------------------------------------------------
# Parameter construction (deterministic; weights stored as (in, out) so that
# y = x @ W + b, equivalent to PyTorch's x @ W.T + b convention)
# ---------------------------------------------------------------------------
def init_params(key, depth, dim, mlp_dim):
    params = []
    for j in range(depth):
        kj = jax.random.fold_in(key, j)
        it = iter(jax.random.split(kj, 96))

        def rnd(shape, s=0.05):
            return s * jax.random.normal(next(it), shape, jnp.float32)

        layer = {
            "sa_ln_g": [1.0 + rnd((dim,), 0.1) for _ in range(4)],
            "sa_ln_b": [rnd((dim,), 0.1) for _ in range(4)],
            "sa_wqkv": [rnd((dim, 3 * dim)) for _ in range(4)],
            "sa_wproj": [rnd((dim, dim)) for _ in range(4)],
            "sa_bproj": [rnd((dim,)) for _ in range(4)],
            "c_ln_g": [1.0 + rnd((dim,), 0.1) for _ in range(4)],
            "c_ln_b": [rnd((dim,), 0.1) for _ in range(4)],
            "c_wqkv": [rnd((dim, 3 * dim)) for _ in range(4)],
            "c_wproj": [rnd((dim, dim)) for _ in range(4)],
            "c_bproj": [rnd((dim,)) for _ in range(4)],
            "ff_ln_g": [1.0 + rnd((dim,), 0.1) for _ in range(4)],
            "ff_ln_b": [rnd((dim,), 0.1) for _ in range(4)],
            "ff_w1": [rnd((dim, mlp_dim)) for _ in range(4)],
            "ff_b1": [rnd((mlp_dim,)) for _ in range(4)],
            "ff_w2": [rnd((mlp_dim, dim)) for _ in range(4)],
            "ff_b2": [rnd((dim,)) for _ in range(4)],
        }
        params.append(layer)
    return params


if __name__ == "__main__":
    B, N, D, HEADS, MLP, DEPTH = 2, 8, 32, 4, 64, 1

    key = jax.random.PRNGKey(0)
    kin, kpos, kpar = jax.random.split(key, 3)
    ms = [jax.random.normal(k, (B, N, D), jnp.float32)
          for k in jax.random.split(kin, 4)]
    pos = [0.1 * jax.random.normal(k, (B, N, D), jnp.float32)
           for k in jax.random.split(kpos, 4)]
    params = init_params(kpar, DEPTH, D, MLP)

    outs = co_transformer_forward(ms[0], ms[1], ms[2], ms[3], pos, params,
                                  heads=HEADS, depth=DEPTH)
    outs = jax.block_until_ready(outs)

    refs = _ref_forward(ms[0], ms[1], ms[2], ms[3], pos, params,
                        heads=HEADS, depth=DEPTH)
    for got, ref in zip(outs, refs):
        assert got.shape == ref.shape
        assert jnp.allclose(got, ref, atol=1e-3, rtol=1e-3), \
            float(jnp.max(jnp.abs(got - ref)))

    print("KERNEL_OK")
</pallas_src>

<mosaic_0001>
module attributes {stable_mosaic.version = 11 : i64} {
  func.func @_addn_kernel(%arg0: i32, %arg1: memref<16x32xf32, #tpu.memory_space<vmem>>, %arg2: memref<16x32xf32, #tpu.memory_space<vmem>>, %arg3: memref<16x32xf32, #tpu.memory_space<vmem>>) attributes {dimension_semantics = [#tpu.dimension_semantics<parallel>], iteration_bounds = array<i64: 1>, scalar_prefetch = 0 : i64, scratch_operands = 0 : i64, tpu.core_type = #tpu.core_type<tc>, window_params = [{transform_indices = @transform_0, window_bounds = array<i64: 16, 32>}, {transform_indices = @transform_1, window_bounds = array<i64: 16, 32>}, {transform_indices = @transform_2, window_bounds = array<i64: 16, 32>}]} {
    %c0 = arith.constant 0 : index
    %c0_0 = arith.constant 0 : index
    %0 = vector.load %arg1[%c0, %c0_0] : memref<16x32xf32, #tpu.memory_space<vmem>>, vector<16x32xf32>
    %c0_1 = arith.constant 0 : index
    %c0_2 = arith.constant 0 : index
    %1 = vector.load %arg2[%c0_1, %c0_2] : memref<16x32xf32, #tpu.memory_space<vmem>>, vector<16x32xf32>
    %2 = arith.addf %0, %1 : vector<16x32xf32>
    %c0_3 = arith.constant 0 : index
    %c0_4 = arith.constant 0 : index
    %3 = vector.load %arg3[%c0_3, %c0_4] : memref<16x32xf32, #tpu.memory_space<vmem>>, vector<16x32xf32>
    tpu.vector_store %arg3[%c0_3, %c0_4], %2 {strides = array<i32>} : memref<16x32xf32, #tpu.memory_space<vmem>>, vector<16x32xf32>,
    return
  }
  func.func @transform_0(%arg0: i32) -> (i32, i32) {
    %c0_i32 = arith.constant 0 : i32
    %c0_i32_0 = arith.constant 0 : i32
    return %arg0, %c0_i32 : i32, i32
  }
  func.func @transform_1(%arg0: i32) -> (i32, i32) {
    %c0_i32 = arith.constant 0 : i32
    %c0_i32_0 = arith.constant 0 : i32
    return %arg0, %c0_i32 : i32, i32
  }
  func.func @transform_2(%arg0: i32) -> (i32, i32) {
    %c0_i32 = arith.constant 0 : i32
    %c0_i32_0 = arith.constant 0 : i32
    return %arg0, %c0_i32 : i32, i32
  }
}

</mosaic_0001>

<llo_original>
// kernel: tpu_custom_call.1
$region0: #{tpu_custom_call.1}
  #allocation0 [shape = 'u32[]', space=smem, size = 0x4, offset = 0x4, fixed_abs, tag = 'smem constant byte address 0x4 - core index']
  #allocation1 [shape = 'u32[144,128]{1,0:T(1,128)}', space=vmem, size = 0x12000, scoped, tag = 'internal scratch']
  %s0 = inlined_call_operand.hbm [shape: f32[16,32], index: 0, kind: input, shape index: {}]
  %s1 = inlined_call_operand.hbm [shape: f32[16,32], index: 1, kind: input, shape index: {}]
  %s2 = inlined_call_operand.hbm [shape: f32[16,32], index: 2, kind: output, shape index: {}]
  %s3 = sld [smem:[#allocation0]]
  $region26: #{tpu_custom_call.1} parent=0
    _
  %s5 = ssub.s32 1, %s3
  %s6 = scalar_select 0, %s5, %s3
  $region1: #{tpu_custom_call.1} parent=0
    #allocation2 [shape = 'u8[8192]{0}', space=vmem, size = 0x2000, scoped, tag = 'input window, operand 0, single buffered']
    #allocation3 [shape = 's32[1]{0}', space=sflag, size = 0x4, scoped, tag = 'scoped memory for tpu_custom_call.1']
    #allocation4 [shape = 's32[1]{0}', space=sflag, size = 0x4, scoped, tag = 'scoped memory for tpu_custom_call.1']
    #allocation5 [shape = 'u8[8192]{0}', space=vmem, size = 0x2000, scoped, tag = 'input window, operand 1, single buffered']
    #allocation6 [shape = 's32[1]{0}', space=sflag, size = 0x4, scoped, tag = 'scoped memory for tpu_custom_call.1']
    #allocation7 [shape = 'u8[8192]{0}', space=vmem, size = 0x2000, scoped, tag = 'output window, operand 0, single buffered']
    %7 = vsyncpa [#allocation3], 0
    %8 = vsyncpa [#allocation6], 0
    %9 = vsyncpa [#allocation4], 0
    // Predicated region
    $region2: #{tpu_custom_call.1} parent=1 // pred_check
      _
    $region3: #{tpu_custom_call.1} parent=1 // pred_check_branch
      %11 = sbr.rel (0) target = $region5
    $region4: #{tpu_custom_call.1} parent=1 // pred_region
      %s13 = ssub.s32 256, 256
      %14 = vsyncadd [#allocation3], %s13
      %s15 = sshll.u32 [#allocation2], 4
      %s16 = int_to_ptr.vmem [resolvable:$true] %s15
      %21 = dma.hbm_to_vmem [thread:$0]  %s0, 256, %s16, [#allocation3], 128, 128, 8
    $region5: #{tpu_custom_call.1} parent=1 // pred_fallthru
      _
    // Predicated region
    $region6: #{tpu_custom_call.1} parent=1 // pred_check
      _
    $region7: #{tpu_custom_call.1} parent=1 // pred_check_branch
      %23 = sbr.rel (0) target = $region9
    $region8: #{tpu_custom_call.1} parent=1 // pred_region
      %s25 = ssub.s32 256, 256
      %26 = vsyncadd [#allocation6], %s25
      %s27 = sshll.u32 [#allocation5], 4
      %s28 = int_to_ptr.vmem [resolvable:$true] %s27
      %33 = dma.hbm_to_vmem [thread:$0]  %s1, 256, %s28, [#allocation6], 128, 128, 8
    $region9: #{tpu_custom_call.1} parent=1 // pred_fallthru
      _
    // Predicated region
    $region10: #{tpu_custom_call.1} parent=1 // pred_check
      _
    $region11: #{tpu_custom_call.1} parent=1 // pred_check_branch
      %35 = sbr.rel (0) target = $region13
    $region12: #{tpu_custom_call.1} parent=1 // pred_region
      %36 = dma.done [#allocation3], 256
    $region13: #{tpu_custom_call.1} parent=1 // pred_fallthru
      _
    // Predicated region
    $region14: #{tpu_custom_call.1} parent=1 // pred_check
      _
    $region15: #{tpu_custom_call.1} parent=1 // pred_check_branch
      %38 = sbr.rel (0) target = $region17
    $region16: #{tpu_custom_call.1} parent=1 // pred_region
      %39 = dma.done [#allocation6], 256
    $region17: #{tpu_custom_call.1} parent=1 // pred_fallthru
      _
    %v40 = vld [vmem:[#allocation2] sm:$0xff]
    %v41 = vld [vmem:[#allocation2 + $0x8] sm:$0xff]
    %v42 = vld [vmem:[#allocation5] sm:$0xff]
    %v43 = vld [vmem:[#allocation5 + $0x8] sm:$0xff]
    %v44 = vadd.f32 %v40, %v42
    %v45 = vadd.f32 %v41, %v43
    %vm46 = vcmask 261120
    %47 = vst.msk [vmem:[#allocation7] sm:$0xff] %vm46, %v44
    %48 = vst.msk [vmem:[#allocation7 + $0x8] sm:$0xff] %vm46, %v45
    // Predicated region
    $region18: #{tpu_custom_call.1} parent=1 // pred_check
      _
    $region19: #{tpu_custom_call.1} parent=1 // pred_check_branch
      %50 = sbr.rel (0) target = $region21
    $region20: #{tpu_custom_call.1} parent=1 // pred_region
      %s52 = ssub.s32 256, 256
      %53 = vsyncadd [#allocation4], %s52
      %s54 = sshll.u32 [#allocation7], 4
      %s55 = int_to_ptr.vmem [resolvable:$true] %s54
      %60 = dma.vmem_to_hbm [thread:$0]  %s55, 256, %s2, [#allocation4], 128, 128, 8
    $region21: #{tpu_custom_call.1} parent=1 // pred_fallthru
      _
    // Predicated region
    $region22: #{tpu_custom_call.1} parent=1 // pred_check
      _
    $region23: #{tpu_custom_call.1} parent=1 // pred_check_branch
      %62 = sbr.rel (0) target = $region25
    $region24: #{tpu_custom_call.1} parent=1 // pred_region
      %63 = dma.done [#allocation4], 256
    $region25: #{tpu_custom_call.1} parent=1 // pred_fallthru
      _
    %64 = vsyncpa [#allocation3], 1
    %65 = vsyncpa [#allocation6], 1
    %66 = vsyncpa [#allocation4], 1

</llo_original>
